<compile_context>
chip_gen: v6e
topology: v6e:2x2x1
jax: 0.10.0
libtpu: 0.0.40
codegen_flags: <defaults>
</compile_context>

<pallas_src>
import functools

import jax
import jax.numpy as jnp
from jax import lax
from jax.experimental import pallas as pl
from jax.experimental.pallas import tpu as pltpu

C1, C2, C3 = 16, 32, 16  # output channels of layer1 / layer2 / layer3


def wavenet_kernel(x_ref, m_ref, w1_ref, b1_ref, w2_ref, b2_ref, w3_ref, b3_ref,
                   o_ref, *, W, D):
    # x_ref : (1, 1, HW)      one batch element, flattened NCHW spatial
    # m_ref : (4, HW)         {0,1} float32 tap-validity masks (ZeroPad2d halo)
    # w1_ref: (16, 1)  b1_ref: (16, 1)
    # w2_ref: (32, 64) b2_ref: (32, 1)    packed columns ordered (kh, kw, cin)
    # w3_ref: (16,128) b3_ref: (16, 1)
    # o_ref : (1, 16, HW)     NCHW-flattened output block (lane-dense store)
    HW = x_ref.shape[-1]

    x = x_ref[0]                                        # (1, HW)

    # ---- layer1: Conv2d(1, 16, kernel 1x1) -- pure VPU broadcast (Cin = 1) ----
    h1 = w1_ref[...] * x + b1_ref[...]                  # (16,1)*(1,HW)+(16,1) -> (16,HW)

    def dilated_conv(h, w_packed, b):
        # h: (Cin, HW), w_packed: (Cout, 4*Cin) -> (Cout, HW)
        taps = []
        for t, (kh, kw) in enumerate(((0, 0), (0, 1), (1, 0), (1, 1))):
            s = kh * W + kw * D                          # flat spatial shift of this tap
            # tap[c, j] = h[c, j + s] where the tap is in-bounds, else 0 (ZeroPad2d).
            # Circular roll is safe: wrapped lanes are exactly the masked ones.
            shifted = h if s == 0 else pltpu.roll(h, shift=HW - s, axis=1)
            if t == 0:
                taps.append(shifted)                     # tap (0,0) is always valid
            else:
                taps.append(shifted * m_ref[t:t + 1, :])
        stacked = jnp.concatenate(taps, axis=0)          # (4*Cin, HW)
        # single packed MXU matmul: K = 4*Cin, N = HW (full 128-lane result width)
        return jnp.dot(w_packed, stacked,
                       preferred_element_type=jnp.float32) + b

    # ---- layer2_pad + layer2: Conv2d(16, 32, k=(2,2), dilation=(1,D)) ----
    h2 = dilated_conv(h1, w2_ref[...], b2_ref[...])      # (32, HW)
    # ---- layer3_pad + layer3: Conv2d(32, 16, k=(2,2), dilation=(1,D)) ----
    h3 = dilated_conv(h2, w3_ref[...], b3_ref[...])      # (16, HW)

    o_ref[0] = h3.astype(o_ref.dtype)                    # lane-dense (16, HW) store


def wavenet_forward(x_nchw, params, dilation_rate):
    """x_nchw: (N, 1, H, W) float32, params in PyTorch OIHW layout."""
    w1, b1, w2, b2, w3, b3 = params
    N, C, H, W = x_nchw.shape
    assert C == 1
    D = dilation_rate
    HW = H * W

    # NCHW stays NCHW: only free (contiguous) reshapes, no transposes.
    x3 = x_nchw.reshape(N, 1, HW).astype(jnp.float32)

    # Pack conv weights for the (Cout, 4*Cin) x (4*Cin, HW) matmuls.
    w1c = w1.reshape(C1, 1).astype(jnp.float32)
    b1c = b1.reshape(C1, 1).astype(jnp.float32)
    w2p = jnp.transpose(w2, (0, 2, 3, 1)).reshape(C2, 4 * C1).astype(jnp.float32)
    b2c = b2.reshape(C2, 1).astype(jnp.float32)
    w3p = jnp.transpose(w3, (0, 2, 3, 1)).reshape(C3, 4 * C2).astype(jnp.float32)
    b3c = b3.reshape(C3, 1).astype(jnp.float32)

    # Per-tap validity masks (identical for both dilated layers), built host-side
    # so the kernel needs no integer div/mod.
    lane = jnp.arange(HW, dtype=jnp.int32)
    row, col = lane // W, lane % W
    masks = jnp.stack(
        [((row + kh < H) & (col + kw * D < W)).astype(jnp.float32)
         for kh in range(2) for kw in range(2)])          # (4, HW)

    kernel = functools.partial(wavenet_kernel, W=W, D=D)

    flops = 2 * N * HW * (4 * C1 * C2 + 4 * C2 * C3) + 6 * N * HW * C1
    bytes_accessed = 4 * (x3.size + N * C3 * HW + masks.size + w1c.size + b1c.size
                          + w2p.size + b2c.size + w3p.size + b3c.size)

    out = pl.pallas_call(
        kernel,
        out_shape=jax.ShapeDtypeStruct((N, C3, HW), jnp.float32),
        grid_spec=pltpu.PrefetchScalarGridSpec(
            num_scalar_prefetch=0,
            grid=(N,),
            in_specs=[
                pl.BlockSpec((1, 1, HW), lambda n: (n, 0, 0)),
                pl.BlockSpec((4, HW), lambda n: (0, 0)),
                pl.BlockSpec((C1, 1), lambda n: (0, 0)),
                pl.BlockSpec((C1, 1), lambda n: (0, 0)),
                pl.BlockSpec((C2, 4 * C1), lambda n: (0, 0)),
                pl.BlockSpec((C2, 1), lambda n: (0, 0)),
                pl.BlockSpec((C3, 4 * C2), lambda n: (0, 0)),
                pl.BlockSpec((C3, 1), lambda n: (0, 0)),
            ],
            out_specs=pl.BlockSpec((1, C3, HW), lambda n: (n, 0, 0)),
        ),
        compiler_params=pltpu.CompilerParams(
            dimension_semantics=("parallel",)),
        cost_estimate=pl.CostEstimate(
            flops=flops, transcendentals=0, bytes_accessed=bytes_accessed),
    )(x3, masks, w1c, b1c, w2p, b2c, w3p, b3c)

    # Free reshape back to (N, 16, H, W) NCHW.
    return out.reshape(N, C3, H, W)


def reference_forward(x_nchw, params, dilation_rate):
    """Pure-JAX reference replicating the PyTorch module semantics."""
    w1, b1, w2, b2, w3, b3 = params
    d = dilation_rate
    dn = ("NCHW", "OIHW", "NCHW")
    hp = lax.Precision.HIGHEST

    y = lax.conv_general_dilated(x_nchw, w1, (1, 1), "VALID",
                                 dimension_numbers=dn, precision=hp)
    y = y + b1[None, :, None, None]
    # ZeroPad2d((left=0, right=d, top=0, bottom=1))
    y = jnp.pad(y, ((0, 0), (0, 0), (0, 1), (0, d)))
    y = lax.conv_general_dilated(y, w2, (1, 1), "VALID", rhs_dilation=(1, d),
                                 dimension_numbers=dn, precision=hp)
    y = y + b2[None, :, None, None]
    y = jnp.pad(y, ((0, 0), (0, 0), (0, 1), (0, d)))
    y = lax.conv_general_dilated(y, w3, (1, 1), "VALID", rhs_dilation=(1, d),
                                 dimension_numbers=dn, precision=hp)
    y = y + b3[None, :, None, None]
    return y


def init_params(key):
    ks = jax.random.split(key, 6)
    w1 = jax.random.normal(ks[0], (16, 1, 1, 1), jnp.float32) * 0.1
    b1 = jax.random.normal(ks[1], (16,), jnp.float32) * 0.1
    w2 = jax.random.normal(ks[2], (32, 16, 2, 2), jnp.float32) * 0.1
    b2 = jax.random.normal(ks[3], (32,), jnp.float32) * 0.1
    w3 = jax.random.normal(ks[4], (16, 32, 2, 2), jnp.float32) * 0.1
    b3 = jax.random.normal(ks[5], (16,), jnp.float32) * 0.1
    return (w1, b1, w2, b2, w3, b3)


if __name__ == "__main__":
    key = jax.random.PRNGKey(0)
    kx, kp = jax.random.split(key)

    N, H, W = 2, 8, 16          # H*W = 128 -> one full lane tile per batch element
    dilation_rate = 2

    x = jax.random.normal(kx, (N, 1, H, W), jnp.float32)   # NCHW, in_channels=1
    params = init_params(kp)

    out = wavenet_forward(x, params, dilation_rate)
    out = jax.block_until_ready(out)

    ref = jax.block_until_ready(reference_forward(x, params, dilation_rate))

    assert out.shape == (N, 16, H, W), out.shape
    assert jnp.allclose(out, ref, rtol=1e-3, atol=1e-3), \
        f"max abs diff {jnp.max(jnp.abs(out - ref))}"

    print("KERNEL_OK")
</pallas_src>

<mosaic_0001>
module attributes {stable_mosaic.version = 11 : i64} {
  func.func @wavenet_kernel(%arg0: i32, %arg1: memref<1x1x128xf32, #tpu.memory_space<vmem>>, %arg2: memref<4x128xf32, #tpu.memory_space<vmem>>, %arg3: memref<16x1xf32, #tpu.memory_space<vmem>>, %arg4: memref<16x1xf32, #tpu.memory_space<vmem>>, %arg5: memref<32x64xf32, #tpu.memory_space<vmem>>, %arg6: memref<32x1xf32, #tpu.memory_space<vmem>>, %arg7: memref<16x128xf32, #tpu.memory_space<vmem>>, %arg8: memref<16x1xf32, #tpu.memory_space<vmem>>, %arg9: memref<1x16x128xf32, #tpu.memory_space<vmem>>) attributes {dimension_semantics = [#tpu.dimension_semantics<parallel>], iteration_bounds = array<i64: 2>, scalar_prefetch = 0 : i64, scratch_operands = 0 : i64, tpu.core_type = #tpu.core_type<tc>, window_params = [{transform_indices = @transform_0, window_bounds = array<i64: 1, 1, 128>}, {pipeline_mode = #tpu.pipeline_mode<synchronous>, transform_indices = @transform_1, window_bounds = array<i64: 4, 128>}, {pipeline_mode = #tpu.pipeline_mode<synchronous>, transform_indices = @transform_2, window_bounds = array<i64: 16, 1>}, {pipeline_mode = #tpu.pipeline_mode<synchronous>, transform_indices = @transform_3, window_bounds = array<i64: 16, 1>}, {pipeline_mode = #tpu.pipeline_mode<synchronous>, transform_indices = @transform_4, window_bounds = array<i64: 32, 64>}, {pipeline_mode = #tpu.pipeline_mode<synchronous>, transform_indices = @transform_5, window_bounds = array<i64: 32, 1>}, {pipeline_mode = #tpu.pipeline_mode<synchronous>, transform_indices = @transform_6, window_bounds = array<i64: 16, 128>}, {pipeline_mode = #tpu.pipeline_mode<synchronous>, transform_indices = @transform_7, window_bounds = array<i64: 16, 1>}, {transform_indices = @transform_8, window_bounds = array<i64: 1, 16, 128>}]} {
    %c0 = arith.constant 0 : index
    %c0_0 = arith.constant 0 : index
    %c0_1 = arith.constant 0 : index
    %0 = vector.load %arg1[%c0, %c0_0, %c0_1] : memref<1x1x128xf32, #tpu.memory_space<vmem>>, vector<1x1x128xf32>
    %1 = vector.shape_cast %0 : vector<1x1x128xf32> to vector<1x128xf32>
    %c0_2 = arith.constant 0 : index
    %c0_3 = arith.constant 0 : index
    %2 = vector.load %arg3[%c0_2, %c0_3] : memref<16x1xf32, #tpu.memory_space<vmem>>, vector<16x1xf32>
    %3 = vector.broadcast %2 : vector<16x1xf32> to vector<16x128xf32>
    %4 = vector.broadcast %1 : vector<1x128xf32> to vector<16x128xf32>
    %5 = arith.mulf %3, %4 : vector<16x128xf32>
    %c0_4 = arith.constant 0 : index
    %c0_5 = arith.constant 0 : index
    %6 = vector.load %arg4[%c0_4, %c0_5] : memref<16x1xf32, #tpu.memory_space<vmem>>, vector<16x1xf32>
    %7 = vector.broadcast %6 : vector<16x1xf32> to vector<16x128xf32>
    %8 = arith.addf %5, %7 : vector<16x128xf32>
    %c0_6 = arith.constant 0 : index
    %c0_7 = arith.constant 0 : index
    %9 = vector.load %arg5[%c0_6, %c0_7] : memref<32x64xf32, #tpu.memory_space<vmem>>, vector<32x64xf32>
    %c0_8 = arith.constant 0 : index
    %c0_9 = arith.constant 0 : index
    %10 = vector.load %arg6[%c0_8, %c0_9] : memref<32x1xf32, #tpu.memory_space<vmem>>, vector<32x1xf32>
    %c126_i32 = arith.constant 126 : i32
    %11 = tpu.dynamic_rotate %8 by %c126_i32 dim 1 : vector<16x128xf32>, i32 -> vector<16x128xf32>
    %c1 = arith.constant 1 : index
    %c0_10 = arith.constant 0 : index
    %12 = vector.load %arg2[%c1, %c0_10] : memref<4x128xf32, #tpu.memory_space<vmem>>, vector<1x128xf32>
    %13 = vector.broadcast %12 : vector<1x128xf32> to vector<16x128xf32>
    %14 = arith.mulf %11, %13 : vector<16x128xf32>
    %c112_i32 = arith.constant 112 : i32
    %15 = tpu.dynamic_rotate %8 by %c112_i32 dim 1 : vector<16x128xf32>, i32 -> vector<16x128xf32>
    %c2 = arith.constant 2 : index
    %c0_11 = arith.constant 0 : index
    %16 = vector.load %arg2[%c2, %c0_11] : memref<4x128xf32, #tpu.memory_space<vmem>>, vector<1x128xf32>
    %17 = vector.broadcast %16 : vector<1x128xf32> to vector<16x128xf32>
    %18 = arith.mulf %15, %17 : vector<16x128xf32>
    %c110_i32 = arith.constant 110 : i32
    %19 = tpu.dynamic_rotate %8 by %c110_i32 dim 1 : vector<16x128xf32>, i32 -> vector<16x128xf32>
    %c3 = arith.constant 3 : index
    %c0_12 = arith.constant 0 : index
    %20 = vector.load %arg2[%c3, %c0_12] : memref<4x128xf32, #tpu.memory_space<vmem>>, vector<1x128xf32>
    %21 = vector.broadcast %20 : vector<1x128xf32> to vector<16x128xf32>
    %22 = arith.mulf %19, %21 : vector<16x128xf32>
    %23 = tpu.concatenate %8, %14, %18, %22 in 0 : vector<16x128xf32>, vector<16x128xf32>, vector<16x128xf32>, vector<16x128xf32> -> vector<64x128xf32>
    %cst = arith.constant dense<0.000000e+00> : vector<32x128xf32>
    %24 = tpu.matmul %9, %23, %cst {dimension_numbers = #tpu.dot_dimension_numbers<[1], [0], [0], [1], [0, 0, 1, 1], [], []>} : vector<32x64xf32>, vector<64x128xf32>, vector<32x128xf32> -> vector<32x128xf32>
    %25 = vector.broadcast %10 : vector<32x1xf32> to vector<32x128xf32>
    %26 = arith.addf %24, %25 : vector<32x128xf32>
    %c0_13 = arith.constant 0 : index
    %c0_14 = arith.constant 0 : index
    %27 = vector.load %arg7[%c0_13, %c0_14] : memref<16x128xf32, #tpu.memory_space<vmem>>, vector<16x128xf32>
    %c0_15 = arith.constant 0 : index
    %c0_16 = arith.constant 0 : index
    %28 = vector.load %arg8[%c0_15, %c0_16] : memref<16x1xf32, #tpu.memory_space<vmem>>, vector<16x1xf32>
    %c126_i32_17 = arith.constant 126 : i32
    %29 = tpu.dynamic_rotate %26 by %c126_i32_17 dim 1 : vector<32x128xf32>, i32 -> vector<32x128xf32>
    %c1_18 = arith.constant 1 : index
    %c0_19 = arith.constant 0 : index
    %30 = vector.load %arg2[%c1_18, %c0_19] : memref<4x128xf32, #tpu.memory_space<vmem>>, vector<1x128xf32>
    %31 = vector.broadcast %30 : vector<1x128xf32> to vector<32x128xf32>
    %32 = arith.mulf %29, %31 : vector<32x128xf32>
    %c112_i32_20 = arith.constant 112 : i32
    %33 = tpu.dynamic_rotate %26 by %c112_i32_20 dim 1 : vector<32x128xf32>, i32 -> vector<32x128xf32>
    %c2_21 = arith.constant 2 : index
    %c0_22 = arith.constant 0 : index
    %34 = vector.load %arg2[%c2_21, %c0_22] : memref<4x128xf32, #tpu.memory_space<vmem>>, vector<1x128xf32>
    %35 = vector.broadcast %34 : vector<1x128xf32> to vector<32x128xf32>
    %36 = arith.mulf %33, %35 : vector<32x128xf32>
    %c110_i32_23 = arith.constant 110 : i32
    %37 = tpu.dynamic_rotate %26 by %c110_i32_23 dim 1 : vector<32x128xf32>, i32 -> vector<32x128xf32>
    %c3_24 = arith.constant 3 : index
    %c0_25 = arith.constant 0 : index
    %38 = vector.load %arg2[%c3_24, %c0_25] : memref<4x128xf32, #tpu.memory_space<vmem>>, vector<1x128xf32>
    %39 = vector.broadcast %38 : vector<1x128xf32> to vector<32x128xf32>
    %40 = arith.mulf %37, %39 : vector<32x128xf32>
    %41 = tpu.concatenate %26, %32, %36, %40 in 0 : vector<32x128xf32>, vector<32x128xf32>, vector<32x128xf32>, vector<32x128xf32> -> vector<128x128xf32>
    %cst_26 = arith.constant dense<0.000000e+00> : vector<16x128xf32>
    %42 = tpu.matmul %27, %41, %cst_26 {dimension_numbers = #tpu.dot_dimension_numbers<[1], [0], [0], [1], [0, 0, 1, 1], [], []>} : vector<16x128xf32>, vector<128x128xf32>, vector<16x128xf32> -> vector<16x128xf32>
    %43 = vector.broadcast %28 : vector<16x1xf32> to vector<16x128xf32>
    %44 = arith.addf %42, %43 : vector<16x128xf32>
    %c0_27 = arith.constant 0 : index
    %c0_28 = arith.constant 0 : index
    %c0_29 = arith.constant 0 : index
    %45 = vector.load %arg9[%c0_27, %c0_28, %c0_29] : memref<1x16x128xf32, #tpu.memory_space<vmem>>, vector<1x16x128xf32>
    %46 = vector.shape_cast %45 : vector<1x16x128xf32> to vector<16x128xf32>
    %47 = vector.shape_cast %44 : vector<16x128xf32> to vector<1x16x128xf32>
    tpu.vector_store %arg9[%c0_27, %c0_28, %c0_29], %47 {strides = array<i32>} : memref<1x16x128xf32, #tpu.memory_space<vmem>>, vector<1x16x128xf32>,
    return
  }
  func.func @transform_0(%arg0: i32) -> (i32, i32, i32) {
    %c0_i32 = arith.constant 0 : i32
    %c0_i32_0 = arith.constant 0 : i32
    %c0_i32_1 = arith.constant 0 : i32
    return %arg0, %c0_i32, %c0_i32_0 : i32, i32, i32
  }
  func.func @transform_1(%arg0: i32) -> (i32, i32) {
    %c0_i32 = arith.constant 0 : i32
    %c0_i32_0 = arith.constant 0 : i32
    %c0_i32_1 = arith.constant 0 : i32
    return %c0_i32, %c0_i32_0 : i32, i32
  }
  func.func @transform_2(%arg0: i32) -> (i32, i32) {
    %c0_i32 = arith.constant 0 : i32
    %c0_i32_0 = arith.constant 0 : i32
    %c0_i32_1 = arith.constant 0 : i32
    return %c0_i32, %c0_i32_0 : i32, i32
  }
  func.func @transform_3(%arg0: i32) -> (i32, i32) {
    %c0_i32 = arith.constant 0 : i32
    %c0_i32_0 = arith.constant 0 : i32
    %c0_i32_1 = arith.constant 0 : i32
    return %c0_i32, %c0_i32_0 : i32, i32
  }
  func.func @transform_4(%arg0: i32) -> (i32, i32) {
    %c0_i32 = arith.constant 0 : i32
    %c0_i32_0 = arith.constant 0 : i32
    %c0_i32_1 = arith.constant 0 : i32
    return %c0_i32, %c0_i32_0 : i32, i32
  }
  func.func @transform_5(%arg0: i32) -> (i32, i32) {
    %c0_i32 = arith.constant 0 : i32
    %c0_i32_0 = arith.constant 0 : i32
    %c0_i32_1 = arith.constant 0 : i32
    return %c0_i32, %c0_i32_0 : i32, i32
  }
  func.func @transform_6(%arg0: i32) -> (i32, i32) {
    %c0_i32 = arith.constant 0 : i32
    %c0_i32_0 = arith.constant 0 : i32
    %c0_i32_1 = arith.constant 0 : i32
    return %c0_i32, %c0_i32_0 : i32, i32
  }
  func.func @transform_7(%arg0: i32) -> (i32, i32) {
    %c0_i32 = arith.constant 0 : i32
    %c0_i32_0 = arith.constant 0 : i32
    %c0_i32_1 = arith.constant 0 : i32
    return %c0_i32, %c0_i32_0 : i32, i32
  }
  func.func @transform_8(%arg0: i32) -> (i32, i32, i32) {
    %c0_i32 = arith.constant 0 : i32
    %c0_i32_0 = arith.constant 0 : i32
    %c0_i32_1 = arith.constant 0 : i32
    return %arg0, %c0_i32, %c0_i32_0 : i32, i32, i32
  }
}

</mosaic_0001>

<llo_original>
// kernel: tpu_custom_call.1
$region0: #{tpu_custom_call.1}
  #allocation0 [shape = 'u32[]', space=smem, size = 0x4, offset = 0x4, fixed_abs, tag = 'smem constant byte address 0x4 - core index']
  #allocation1 [shape = 'u32[144,128]{1,0:T(1,128)}', space=vmem, size = 0x12000, scoped, tag = 'internal scratch']
  %s0 = inlined_call_operand.vmem [shape: f32[2,1,128], index: 0, kind: input, shape index: {}]
  %s1 = inlined_call_operand.vmem [shape: f32[4,128], index: 1, kind: input, shape index: {}]
  %s2 = inlined_call_operand.vmem [shape: f32[16,1], index: 2, kind: input, shape index: {}]
  %s3 = inlined_call_operand.vmem [shape: f32[16,1], index: 3, kind: input, shape index: {}]
  %s4 = inlined_call_operand.vmem [shape: f32[32,64], index: 4, kind: input, shape index: {}]
  %s5 = inlined_call_operand.vmem [shape: f32[32,1], index: 5, kind: input, shape index: {}]
  %s6 = inlined_call_operand.vmem [shape: f32[16,128], index: 6, kind: input, shape index: {}]
  %s7 = inlined_call_operand.vmem [shape: f32[16,1], index: 7, kind: input, shape index: {}]
  %s8 = inlined_call_operand.hbm [shape: f32[2,16,128], index: 8, kind: output, shape index: {}]
  %s9 = sld [smem:[#allocation0]]
  $region65: #{tpu_custom_call.1} parent=0
    _
  %s11 = ssub.s32 1, %s9
  %s12 = scalar_select 0, %s11, %s9
  $region1: #{tpu_custom_call.1} parent=0
    #allocation2 [shape = 'u8[16384]{0}', space=vmem, size = 0x4000, scoped, tag = 'output window, operand 0']
    #allocation3 [shape = 's32[2]{0}', space=sflag, size = 0x8, scoped, tag = 'scoped memory for tpu_custom_call.1']
    %13 = vsyncpa [#allocation3], 0
    %s14 = scalar_lea.sflag [#allocation3], 1
    %15 = vsyncpa %s14, 0
    loop: start=0, step=1, limit=4
    $region2: #{tpu_custom_call.1} parent=1 // loop_pre_header
      _
    $region3: #{tpu_custom_call.1} parent=1 // loop_header
      %s17 = sphi 0, %s21
      %p18 = scmp.ge.s32.totalorder %s17, 4
      %s27 = sphi 0, %s29
      %s30 = sphi 0, %s27
      %s31 = sphi 0, %s30
      %s47 = sphi 0, %s31
      %s51 = sphi 0, %s51
      %s53 = sphi 0, %s51
      %s54 = sphi 0, %s53
      %s68 = sphi 0, %s54
      %s72 = sphi 0, %s72
      %s74 = sphi 0, %s72
      %s75 = sphi 0, %s74
      %s89 = sphi 0, %s75
      %s93 = sphi 0, %s93
      %s95 = sphi 0, %s93
      %s96 = sphi 0, %s95
      %s110 = sphi 0, %s96
      %s114 = sphi 0, %s114
      %s116 = sphi 0, %s114
      %s117 = sphi 0, %s116
      %s131 = sphi 0, %s117
      %s135 = sphi 0, %s135
      %s137 = sphi 0, %s135
      %s138 = sphi 0, %s137
      %s152 = sphi 0, %s138
      %s156 = sphi 0, %s156
      %s158 = sphi 0, %s156
      %s159 = sphi 0, %s158
      %s173 = sphi 0, %s159
      %s177 = sphi 0, %s177
      %s179 = sphi 0, %s177
      %s180 = sphi 0, %s179
      %s194 = sphi 0, %s180
      %s200 = sphi 0, %s202
      %s203 = sphi 0, %s200
      %s204 = sphi 0, %s203
      %s220 = sphi 0, %s204
    $region4: #{tpu_custom_call.1} parent=1 // loop_header_branch
      %20 = sbr.rel (%p18) target = $region8
    $region5: #{tpu_custom_call.1} parent=1 // loop_body
      %s22 = ssub.s32 %s17, 1
      %s23 = ssub.s32 %s17, 2
      %s24 = sadd.s32 %s17, 1
      %s25 = ssub.s32 %s17, %s24
      %p26 = scmp.eq.s32.totalorder %s25, 0
      %s28 = sadd.s32 %s27, 1
      %s29 = scalar_select %p26, %s27, %s28
      %p32 = pneg %p26
      %p33 = scmp.eq.s32.totalorder %s17, 1
      %p34 = por %p32, %p33
      %p35 = scmp.ne.s32.totalorder %s27, %s30
      %p36 = scmp.eq.s32.totalorder %s17, 0
      %p37 = por %p35, %p36
      %p38 = scmp.ne.s32.totalorder %s27, %s30
      %p39 = scmp.eq.s32.totalorder %s22, 1
      %p40 = por %p38, %p39
      %p41 = scmp.ne.s32.totalorder %s30, %s31
      %p42 = scmp.eq.s32.totalorder %s22, 0
      %p43 = por %p41, %p42
      %p44 = scmp.ne.s32.totalorder %s30, %s31
      %p45 = scmp.eq.s32.totalorder %s23, 1
      %p46 = por %p44, %p45
      %p48 = scmp.ne.s32.totalorder %s31, %s47
      %p49 = scmp.eq.s32.totalorder %s23, 0
      %p50 = por %p48, %p49
      %s52 = sadd.s32 %s51, 1
      %p55 = scmp.eq.s32.totalorder %s17, 1
      %p56 = scmp.ne.s32.totalorder %s51, %s53
      %p57 = scmp.eq.s32.totalorder %s17, 0
      %p58 = por %p56, %p57
      %p59 = scmp.ne.s32.totalorder %s51, %s53
      %p60 = scmp.eq.s32.totalorder %s22, 1
      %p61 = por %p59, %p60
      %p62 = scmp.ne.s32.totalorder %s53, %s54
      %p63 = scmp.eq.s32.totalorder %s22, 0
      %p64 = por %p62, %p63
      %p65 = scmp.ne.s32.totalorder %s53, %s54
      %p66 = scmp.eq.s32.totalorder %s23, 1
      %p67 = por %p65, %p66
      %p69 = scmp.ne.s32.totalorder %s54, %s68
      %p70 = scmp.eq.s32.totalorder %s23, 0
      %p71 = por %p69, %p70
      %s73 = sadd.s32 %s72, 1
      %p76 = scmp.eq.s32.totalorder %s17, 1
      %p77 = scmp.ne.s32.totalorder %s72, %s74
      %p78 = scmp.eq.s32.totalorder %s17, 0
      %p79 = por %p77, %p78
      %p80 = scmp.ne.s32.totalorder %s72, %s74
      %p81 = scmp.eq.s32.totalorder %s22, 1
      %p82 = por %p80, %p81
      %p83 = scmp.ne.s32.totalorder %s74, %s75
      %p84 = scmp.eq.s32.totalorder %s22, 0
      %p85 = por %p83, %p84
      %p86 = scmp.ne.s32.totalorder %s74, %s75
      %p87 = scmp.eq.s32.totalorder %s23, 1
      %p88 = por %p86, %p87
      %p90 = scmp.ne.s32.totalorder %s75, %s89
      %p91 = scmp.eq.s32.totalorder %s23, 0
      %p92 = por %p90, %p91
      %s94 = sadd.s32 %s93, 1
      %p97 = scmp.eq.s32.totalorder %s17, 1
      %p98 = scmp.ne.s32.totalorder %s93, %s95
      %p99 = scmp.eq.s32.totalorder %s17, 0
      %p100 = por %p98, %p99
      %p101 = scmp.ne.s32.totalorder %s93, %s95
      %p102 = scmp.eq.s32.totalorder %s22, 1
      %p103 = por %p101, %p102
      %p104 = scmp.ne.s32.totalorder %s95, %s96
      %p105 = scmp.eq.s32.totalorder %s22, 0
      %p106 = por %p104, %p105
      %p107 = scmp.ne.s32.totalorder %s95, %s96
      %p108 = scmp.eq.s32.totalorder %s23, 1
      %p109 = por %p107, %p108
      %p111 = scmp.ne.s32.totalorder %s96, %s110
      %p112 = scmp.eq.s32.totalorder %s23, 0
      %p113 = por %p111, %p112
      %s115 = sadd.s32 %s114, 1
      %p118 = scmp.eq.s32.totalorder %s17, 1
      %p119 = scmp.ne.s32.totalorder %s114, %s116
      %p120 = scmp.eq.s32.totalorder %s17, 0
      %p121 = por %p119, %p120
      %p122 = scmp.ne.s32.totalorder %s114, %s116
      %p123 = scmp.eq.s32.totalorder %s22, 1
      %p124 = por %p122, %p123
      %p125 = scmp.ne.s32.totalorder %s116, %s117
      %p126 = scmp.eq.s32.totalorder %s22, 0
      %p127 = por %p125, %p126
      %p128 = scmp.ne.s32.totalorder %s116, %s117
      %p129 = scmp.eq.s32.totalorder %s23, 1
      %p130 = por %p128, %p129
      %p132 = scmp.ne.s32.totalorder %s117, %s131
      %p133 = scmp.eq.s32.totalorder %s23, 0
      %p134 = por %p132, %p133
      %s136 = sadd.s32 %s135, 1
      %p139 = scmp.eq.s32.totalorder %s17, 1
      %p140 = scmp.ne.s32.totalorder %s135, %s137
      %p141 = scmp.eq.s32.totalorder %s17, 0
      %p142 = por %p140, %p141
      %p143 = scmp.ne.s32.totalorder %s135, %s137
      %p144 = scmp.eq.s32.totalorder %s22, 1
      %p145 = por %p143, %p144
      %p146 = scmp.ne.s32.totalorder %s137, %s138
      %p147 = scmp.eq.s32.totalorder %s22, 0
      %p148 = por %p146, %p147
      %p149 = scmp.ne.s32.totalorder %s137, %s138
      %p150 = scmp.eq.s32.totalorder %s23, 1
      %p151 = por %p149, %p150
      %p153 = scmp.ne.s32.totalorder %s138, %s152
      %p154 = scmp.eq.s32.totalorder %s23, 0
      %p155 = por %p153, %p154
      %s157 = sadd.s32 %s156, 1
      %p160 = scmp.eq.s32.totalorder %s17, 1
      %p161 = scmp.ne.s32.totalorder %s156, %s158
      %p162 = scmp.eq.s32.totalorder %s17, 0
      %p163 = por %p161, %p162
      %p164 = scmp.ne.s32.totalorder %s156, %s158
      %p165 = scmp.eq.s32.totalorder %s22, 1
      %p166 = por %p164, %p165
      %p167 = scmp.ne.s32.totalorder %s158, %s159
      %p168 = scmp.eq.s32.totalorder %s22, 0
      %p169 = por %p167, %p168
      %p170 = scmp.ne.s32.totalorder %s158, %s159
      %p171 = scmp.eq.s32.totalorder %s23, 1
      %p172 = por %p170, %p171
      %p174 = scmp.ne.s32.totalorder %s159, %s173
      %p175 = scmp.eq.s32.totalorder %s23, 0
      %p176 = por %p174, %p175
      %s178 = sadd.s32 %s177, 1
      %p181 = scmp.eq.s32.totalorder %s17, 1
      %p182 = scmp.ne.s32.totalorder %s177, %s179
      %p183 = scmp.eq.s32.totalorder %s17, 0
      %p184 = por %p182, %p183
      %p185 = scmp.ne.s32.totalorder %s177, %s179
      %p186 = scmp.eq.s32.totalorder %s22, 1
      %p187 = por %p185, %p186
      %p188 = scmp.ne.s32.totalorder %s179, %s180
      %p189 = scmp.eq.s32.totalorder %s22, 0
      %p190 = por %p188, %p189
      %p191 = scmp.ne.s32.totalorder %s179, %s180
      %p192 = scmp.eq.s32.totalorder %s23, 1
      %p193 = por %p191, %p192
      %p195 = scmp.ne.s32.totalorder %s180, %s194
      %p196 = scmp.eq.s32.totalorder %s23, 0
      %p197 = por %p195, %p196
      %s198 = ssub.s32 %s17, %s24
      %p199 = scmp.eq.s32.totalorder %s198, 0
      %s201 = sadd.s32 %s200, 1
      %s202 = scalar_select %p199, %s200, %s201
      %p205 = pneg %p199
      %p206 = scmp.eq.s32.totalorder %s17, 1
      %p207 = por %p205, %p206
      %p208 = scmp.ne.s32.totalorder %s200, %s203
      %p209 = scmp.eq.s32.totalorder %s17, 0
      %p210 = por %p208, %p209
      %p211 = scmp.ne.s32.totalorder %s200, %s203
      %p212 = scmp.eq.s32.totalorder %s22, 1
      %p213 = por %p211, %p212
      %p214 = scmp.ne.s32.totalorder %s203, %s204
      %p215 = scmp.eq.s32.totalorder %s22, 0
      %p216 = por %p214, %p215
      %p217 = scmp.ne.s32.totalorder %s203, %s204
      %p218 = scmp.eq.s32.totalorder %s23, 1
      %p219 = por %p217, %p218
      %p221 = scmp.ne.s32.totalorder %s204, %s220
      %p222 = scmp.eq.s32.totalorder %s23, 0
      %p223 = por %p221, %p222
      %p224 = scmp.le.s32.totalorder 1, %s17
      %p225 = scmp.lt.s32.totalorder %s17, 3
      %p226 = pnand %p224, %p225
      %p227 = pneg %p226
      // Predicated region
      $region9: #{tpu_custom_call.1} parent=5 // pred_check
        _
      $region10: #{tpu_custom_call.1} parent=5 // pred_check_branch
        %229 = sbr.rel (%p226) target = $region12
      $region11: #{tpu_custom_call.1} parent=5 // pred_region
        %s230 = ssub.s32 %s17, 1
        // Predicated region
        $region13: #{tpu_custom_call.1} parent=11 // pred_check
          %p231 = pneg %p64
        $region14: #{tpu_custom_call.1} parent=11 // pred_check_branch
          %233 = sbr.rel (%p231) target = $region16
        $region15: #{tpu_custom_call.1} parent=11 // pred_region
          _
        $region16: #{tpu_custom_call.1} parent=11 // pred_fallthru
          _
        // Predicated region
        $region17: #{tpu_custom_call.1} parent=11 // pred_check
          %p234 = pneg %p85
        $region18: #{tpu_custom_call.1} parent=11 // pred_check_branch
          %236 = sbr.rel (%p234) target = $region20
        $region19: #{tpu_custom_call.1} parent=11 // pred_region
          _
        $region20: #{tpu_custom_call.1} parent=11 // pred_fallthru
          _
        // Predicated region
        $region21: #{tpu_custom_call.1} parent=11 // pred_check
          %p237 = pneg %p106
        $region22: #{tpu_custom_call.1} parent=11 // pred_check_branch
          %239 = sbr.rel (%p237) target = $region24
        $region23: #{tpu_custom_call.1} parent=11 // pred_region
          _
        $region24: #{tpu_custom_call.1} parent=11 // pred_fallthru
          _
        // Predicated region
        $region25: #{tpu_custom_call.1} parent=11 // pred_check
          %p240 = pneg %p127
        $region26: #{tpu_custom_call.1} parent=11 // pred_check_branch
          %242 = sbr.rel (%p240) target = $region28
        $region27: #{tpu_custom_call.1} parent=11 // pred_region
          _
        $region28: #{tpu_custom_call.1} parent=11 // pred_fallthru
          _
        // Predicated region
        $region29: #{tpu_custom_call.1} parent=11 // pred_check
          %p243 = pneg %p148
        $region30: #{tpu_custom_call.1} parent=11 // pred_check_branch
          %245 = sbr.rel (%p243) target = $region32
        $region31: #{tpu_custom_call.1} parent=11 // pred_region
          _
        $region32: #{tpu_custom_call.1} parent=11 // pred_fallthru
          _
        // Predicated region
        $region33: #{tpu_custom_call.1} parent=11 // pred_check
          %p246 = pneg %p169
        $region34: #{tpu_custom_call.1} parent=11 // pred_check_branch
          %248 = sbr.rel (%p246) target = $region36
        $region35: #{tpu_custom_call.1} parent=11 // pred_region
          _
        $region36: #{tpu_custom_call.1} parent=11 // pred_fallthru
          _
        // Predicated region
        $region37: #{tpu_custom_call.1} parent=11 // pred_check
          %p249 = pneg %p190
        $region38: #{tpu_custom_call.1} parent=11 // pred_check_branch
          %251 = sbr.rel (%p249) target = $region40
        $region39: #{tpu_custom_call.1} parent=11 // pred_region
          _
        $region40: #{tpu_custom_call.1} parent=11 // pred_fallthru
          _
      $region12: #{tpu_custom_call.1} parent=5 // pred_fallthru
        _
      %p252 = scmp.lt.s32.totalorder %s17, 2
      // Predicated region
      $region41: #{tpu_custom_call.1} parent=5 // pred_check
        %p253 = pneg %p252
      $region42: #{tpu_custom_call.1} parent=5 // pred_check_branch
        %255 = sbr.rel (%p253) target = $region44
      $region43: #{tpu_custom_call.1} parent=5 // pred_region
        // Predicated region
        $region45: #{tpu_custom_call.1} parent=43 // pred_check
          %p256 = pneg %p37
        $region46: #{tpu_custom_call.1} parent=43 // pred_check_branch
          %258 = sbr.rel (%p256) target = $region48
        $region47: #{tpu_custom_call.1} parent=43 // pred_region
          %p259 = scmp.lt.s32.totalorder %s17, 1
          %s260 = scalar_select %p259, %s17, 1
          %s261 = scalar_lea.vmem %s0, %s260
        $region48: #{tpu_custom_call.1} parent=43 // pred_fallthru
          _
      $region44: #{tpu_custom_call.1} parent=5 // pred_fallthru
        _
      %p262 = scmp.le.s32.totalorder 1, %s17
      %p263 = scmp.lt.s32.totalorder %s17, 3
      %p264 = pnand %p262, %p263
      %p265 = pneg %p264
      // Predicated region
      $region49: #{tpu_custom_call.1} parent=5 // pred_check
        _
      $region50: #{tpu_custom_call.1} parent=5 // pred_check_branch
        %267 = sbr.rel (%p264) target = $region52
      $region51: #{tpu_custom_call.1} parent=5 // pred_region
        %s268 = ssub.s32 %s17, 1
        %p269 = scmp.lt.s32.totalorder %s22, 1
        %s270 = scalar_select %p269, %s22, 1
        %s271 = scalar_lea.vmem %s0, %s270
        %p272 = pneg %p43
        %p273 = pneg %p40
        %p274 = pneg %p64
        %p275 = pneg %p61
        %p276 = pneg %p85
        %p277 = pneg %p82
        %p278 = pneg %p106
        %p279 = pneg %p103
        %p280 = pneg %p127
        %p281 = pneg %p124
        %p282 = pneg %p148
        %p283 = pneg %p145
        %p284 = pneg %p169
        %p285 = pneg %p166
        %p286 = pneg %p190
        %p287 = pneg %p187
        %p288 = pneg %p216
        %p289 = pneg %p213
        %s290 = sand.u32 %s203, 1
        %s291 = scalar_lea.sflag [#allocation3], %s290
        %s292 = sand.u32 %s203, 1
        %s293 = smul.addr %s292, 16
        %s294 = scalar_lea.vmem [#allocation2], %s293
        %p295 = scmp.lt.s32.totalorder %s22, 1
        %s296 = scalar_select %p295, %s22, 1
        %s297 = scalar_lea.vmem %s0, %s296
        %v298 = vld [vmem:[%s297] sm:$0x1]
        %v299 = vld [vmem:[%s2] sm:$0xff]
        %v300 = vld [vmem:[%s2 + $0x8] sm:$0xff]
        %302 = vset.pattern.permute.xlu0 0
        %303 = vperm.xlu0 %302, %v299
        %v304 = vpop.permute.xlu0 %303
        %307 = vset.pattern.permute.xlu0 0
        %308 = vperm.xlu0 %307, %v300
        %v309 = vpop.permute.xlu0 %308
        %v312 = vlaneseq
        %v313 = vshrl.u32 %v312, 7
        %v314 = vsub.s32 0, %v313
        %v315 = vrot.slane %v298, %v314
        %v317 = vmul.f32 %v304, %v315
        %v318 = vmul.f32 %v309, %v315
        %v319 = vld [vmem:[%s3] sm:$0xff]
        %v320 = vld [vmem:[%s3 + $0x8] sm:$0xff]
        %322 = vset.pattern.permute.xlu0 0
        %323 = vperm.xlu0 %322, %v319
        %v324 = vpop.permute.xlu0 %323
        %327 = vset.pattern.permute.xlu0 0
        %328 = vperm.xlu0 %327, %v320
        %v329 = vpop.permute.xlu0 %328
        %v331 = vadd.f32 %v317, %v324
        %v332 = vadd.f32 %v318, %v329
        %v333 = vld [vmem:[%s4] sm:$0xff]
        %v334 = vld [vmem:[%s4 + $0x8] sm:$0xff]
        %v335 = vld [vmem:[%s4 + $0x10] sm:$0xff]
        %v336 = vld [vmem:[%s4 + $0x18] sm:$0xff]
        %v337 = vld [vmem:[%s5] sm:$0xff]
        %v338 = vld [vmem:[%s5 + $0x8] sm:$0xff]
        %v339 = vld [vmem:[%s5 + $0x10] sm:$0xff]
        %v340 = vld [vmem:[%s5 + $0x18] sm:$0xff]
        %341 = vrot.lane.b32.xlu0 %v331, 126
        %v342 = vpop.permute.xlu0 %341
        %343 = vrot.lane.b32.xlu0 %v332, 126
        %v344 = vpop.permute.xlu0 %343
        %v345 = vld [vmem:[%s1 + $0x1] sm:$0x1]
        %v346 = vlaneseq
        %v347 = vshrl.u32 %v346, 7
        %v348 = vsub.s32 0, %v347
        %v349 = vrot.slane %v345, %v348
        %v350 = vmul.f32 %v342, %v349
        %v351 = vmul.f32 %v344, %v349
        %352 = vrot.lane.b32.xlu0 %v331, 112
        %v353 = vpop.permute.xlu0 %352
        %354 = vrot.lane.b32.xlu0 %v332, 112
        %v355 = vpop.permute.xlu0 %354
        %v356 = vld [vmem:[%s1 + $0x2] sm:$0x1]
        %v357 = vlaneseq
        %v358 = vshrl.u32 %v357, 7
        %v359 = vsub.s32 0, %v358
        %v360 = vrot.slane %v356, %v359
        %v361 = vmul.f32 %v353, %v360
        %v362 = vmul.f32 %v355, %v360
        %363 = vrot.lane.b32.xlu0 %v331, 110
        %v364 = vpop.permute.xlu0 %363
        %365 = vrot.lane.b32.xlu0 %v332, 110
        %v366 = vpop.permute.xlu0 %365
        %v367 = vld [vmem:[%s1 + $0x3] sm:$0x1]
        %v368 = vlaneseq
        %v369 = vshrl.u32 %v368, 7
        %v370 = vsub.s32 0, %v369
        %v371 = vrot.slane %v367, %v370
        %v372 = vmul.f32 %v364, %v371
        %v373 = vmul.f32 %v366, %v371
        %375 = vset.pattern.permute.xlu0 0
        %376 = vperm.xlu0 %375, %v337
        %v377 = vpop.permute.xlu0 %376
        %380 = vset.pattern.permute.xlu0 0
        %381 = vperm.xlu0 %380, %v338
        %v382 = vpop.permute.xlu0 %381
        %385 = vset.pattern.permute.xlu0 0
        %386 = vperm.xlu0 %385, %v339
        %v387 = vpop.permute.xlu0 %386
        %390 = vset.pattern.permute.xlu0 0
        %391 = vperm.xlu0 %390, %v340
        %v392 = vpop.permute.xlu0 %391
        %vm394 = vcmask 523264
        %v396 = vsel %vm394, %v333, 0
        %v399 = vsel %vm394, %v334, 0
        %v402 = vsel %vm394, %v335, 0
        %v405 = vsel %vm394, %v336, 0
        %407 = vmatprep.subr.mxu0 0.0
        %408 = vmatpush1.msra.mxu0 0.0
        %409 = vmatprep.subr.mxu0 0.0
        %410 = vmatpush1.msra.mxu0 0.0
        %411 = vmatprep.subr.mxu0 0.0
        %412 = vmatpush1.msra.mxu0 0.0
        %413 = vmatprep.subr.mxu0 0.0
        %414 = vmatpush1.msra.mxu0 0.0
        %415 = vmatprep.subr.mxu0 0.0
        %416 = vmatpush1.msra.mxu0 0.0
        %417 = vmatprep.subr.mxu0 0.0
        %418 = vmatpush1.msra.mxu0 0.0
        %419 = vmatprep.subr.mxu0 0.0
        %420 = vmatpush1.msra.mxu0 0.0
        %421 = vmatprep.subr.mxu0 0.0
        %422 = vmatpush1.msra.mxu0 0.0
        %423 = vmatprep.subr.mxu0 0.0
        %424 = vmatpush1.msra.mxu0 %v373
        %425 = vmatprep.subr.mxu0 0.0
        %426 = vmatpush1.msra.mxu0 %v372
        %427 = vmatprep.subr.mxu0 0.0
        %428 = vmatpush1.msra.mxu0 %v362
        %429 = vmatprep.subr.mxu0 0.0
        %430 = vmatpush1.msra.mxu0 %v361
        %431 = vmatprep.subr.mxu0 0.0
        %432 = vmatpush1.msra.mxu0 %v351
        %433 = vmatprep.subr.mxu0 0.0
        %434 = vmatpush1.msra.mxu0 %v350
        %435 = vmatprep.subr.mxu0 0.0
        %436 = vmatpush1.msra.mxu0 %v332
        %437 = vmatprep.subr.mxu0 0.0
        %438 = vmatpush1.msra.mxu0 %v331
        %439 = vmatprep.subr.mxu0 0.0
        %440 = vmatpush2.msra.mxu0 0.0
        %441 = vmatprep.subr.mxu0 0.0
        %442 = vmatpush2.msra.mxu0 0.0
        %443 = vmatprep.subr.mxu0 0.0
        %444 = vmatpush2.msra.mxu0 0.0
        %445 = vmatprep.subr.mxu0 0.0
        %446 = vmatpush2.msra.mxu0 0.0
        %447 = vmatprep.subr.mxu0 0.0
        %448 = vmatpush2.msra.mxu0 0.0
        %449 = vmatprep.subr.mxu0 0.0
        %450 = vmatpush2.msra.mxu0 0.0
        %451 = vmatprep.subr.mxu0 0.0
        %452 = vmatpush2.msra.mxu0 0.0
        %453 = vmatprep.subr.mxu0 0.0
        %454 = vmatpush2.msra.mxu0 0.0
        %455 = vmatprep.subr.mxu0 0.0
        %456 = vmatpush2.msra.mxu0 0.0
        %457 = vmatprep.subr.mxu0 0.0
        %458 = vmatpush2.msra.mxu0 0.0
        %459 = vmatprep.subr.mxu0 0.0
        %460 = vmatpush2.msra.mxu0 0.0
        %461 = vmatprep.subr.mxu0 0.0
        %462 = vmatpush2.msra.mxu0 0.0
        %463 = vmatprep.subr.mxu0 0.0
        %464 = vmatpush2.msra.mxu0 0.0
        %465 = vmatprep.subr.mxu0 0.0
        %466 = vmatpush2.msra.mxu0 0.0
        %467 = vmatprep.subr.mxu0 0.0
        %468 = vmatpush2.msra.mxu0 0.0
        %469 = vmatprep.subr.mxu0 0.0
        %470 = vmatpush2.msra.mxu0 0.0
        %471 = vmatprep.mubr.f32.mxu0 0.0
        %472 = vmatmul.mubr.f32.gmra.mxu0 %v396
        %v473 = vpop.f32.mrf.mxu0
        %v474 = vadd.f32 %v377, %v473
        %v475 = vpop.f32.mrf.mxu0
        %476 = vmatprep.mubr.f32.mxu0 0.0
        %477 = vmatmul.mubr.f32.gmra.mxu0 %v399
        %v478 = vpop.f32.mrf.mxu0
        %v479 = vadd.f32 %v382, %v478
        %v480 = vpop.f32.mrf.mxu0
        %481 = vmatprep.mubr.f32.mxu0 0.0
        %482 = vmatmul.mubr.f32.gmra.mxu0 %v402
        %v483 = vpop.f32.mrf.mxu0
        %v484 = vadd.f32 %v387, %v483
        %v485 = vpop.f32.mrf.mxu0
        %486 = vmatprep.mubr.f32.mxu0 0.0
        %487 = vmatmul.mubr.f32.gmra.mxu0 %v405
        %v488 = vpop.f32.mrf.mxu0
        %v489 = vadd.f32 %v392, %v488
        %v490 = vpop.f32.mrf.mxu0
        %491 = vdwg.mxu0
        %v492 = vld [vmem:[%s6] sm:$0xff]
        %v493 = vld [vmem:[%s6 + $0x8] sm:$0xff]
        %v494 = vld [vmem:[%s7] sm:$0xff]
        %v495 = vld [vmem:[%s7 + $0x8] sm:$0xff]
        %496 = vrot.lane.b32.xlu0 %v474, 126
        %v497 = vpop.permute.xlu0 %496
        %498 = vrot.lane.b32.xlu0 %v479, 126
        %v499 = vpop.permute.xlu0 %498
        %500 = vrot.lane.b32.xlu0 %v484, 126
        %v501 = vpop.permute.xlu0 %500
        %502 = vrot.lane.b32.xlu0 %v489, 126
        %v503 = vpop.permute.xlu0 %502
        %v504 = vmul.f32 %v497, %v349
        %v505 = vmul.f32 %v499, %v349
        %v506 = vmul.f32 %v501, %v349
        %v507 = vmul.f32 %v503, %v349
        %508 = vrot.lane.b32.xlu0 %v474, 112
        %v509 = vpop.permute.xlu0 %508
        %510 = vrot.lane.b32.xlu0 %v479, 112
        %v511 = vpop.permute.xlu0 %510
        %512 = vrot.lane.b32.xlu0 %v484, 112
        %v513 = vpop.permute.xlu0 %512
        %514 = vrot.lane.b32.xlu0 %v489, 112
        %v515 = vpop.permute.xlu0 %514
        %v516 = vmul.f32 %v509, %v360
        %v517 = vmul.f32 %v511, %v360
        %v518 = vmul.f32 %v513, %v360
        %v519 = vmul.f32 %v515, %v360
        %520 = vrot.lane.b32.xlu0 %v474, 110
        %v521 = vpop.permute.xlu0 %520
        %522 = vrot.lane.b32.xlu0 %v479, 110
        %v523 = vpop.permute.xlu0 %522
        %524 = vrot.lane.b32.xlu0 %v484, 110
        %v525 = vpop.permute.xlu0 %524
        %526 = vrot.lane.b32.xlu0 %v489, 110
        %v527 = vpop.permute.xlu0 %526
        %v528 = vmul.f32 %v521, %v371
        %v529 = vmul.f32 %v523, %v371
        %v530 = vmul.f32 %v525, %v371
        %v531 = vmul.f32 %v527, %v371
        %533 = vset.pattern.permute.xlu0 0
        %534 = vperm.xlu0 %533, %v494
        %v535 = vpop.permute.xlu0 %534
        %538 = vset.pattern.permute.xlu0 0
        %539 = vperm.xlu0 %538, %v495
        %v540 = vpop.permute.xlu0 %539
        %542 = vmatprep.subr.mxu0 0.0
        %543 = vmatpush1.msra.mxu0 %v531
        %544 = vmatprep.subr.mxu0 0.0
        %545 = vmatpush1.msra.mxu0 %v530
        %546 = vmatprep.subr.mxu0 0.0
        %547 = vmatpush1.msra.mxu0 %v529
        %548 = vmatprep.subr.mxu0 0.0
        %549 = vmatpush1.msra.mxu0 %v528
        %550 = vmatprep.subr.mxu0 0.0
        %551 = vmatpush1.msra.mxu0 %v519
        %552 = vmatprep.subr.mxu0 0.0
        %553 = vmatpush1.msra.mxu0 %v518
        %554 = vmatprep.subr.mxu0 0.0
        %555 = vmatpush1.msra.mxu0 %v517
        %556 = vmatprep.subr.mxu0 0.0
        %557 = vmatpush1.msra.mxu0 %v516
        %558 = vmatprep.subr.mxu0 0.0
        %559 = vmatpush1.msra.mxu0 %v507
        %560 = vmatprep.subr.mxu0 0.0
        %561 = vmatpush1.msra.mxu0 %v506
        %562 = vmatprep.subr.mxu0 0.0
        %563 = vmatpush1.msra.mxu0 %v505
        %564 = vmatprep.subr.mxu0 0.0
        %565 = vmatpush1.msra.mxu0 %v504
        %566 = vmatprep.subr.mxu0 0.0
        %567 = vmatpush1.msra.mxu0 %v489
        %568 = vmatprep.subr.mxu0 0.0
        %569 = vmatpush1.msra.mxu0 %v484
        %570 = vmatprep.subr.mxu0 0.0
        %571 = vmatpush1.msra.mxu0 %v479
        %572 = vmatprep.subr.mxu0 0.0
        %573 = vmatpush1.msra.mxu0 %v474
        %574 = vmatprep.subr.mxu0 0.0
        %575 = vmatpush2.msra.mxu0 0.0
        %576 = vmatprep.subr.mxu0 0.0
        %577 = vmatpush2.msra.mxu0 0.0
        %578 = vmatprep.subr.mxu0 0.0
        %579 = vmatpush2.msra.mxu0 0.0
        %580 = vmatprep.subr.mxu0 0.0
        %581 = vmatpush2.msra.mxu0 0.0
        %582 = vmatprep.subr.mxu0 0.0
        %583 = vmatpush2.msra.mxu0 0.0
        %584 = vmatprep.subr.mxu0 0.0
        %585 = vmatpush2.msra.mxu0 0.0
        %586 = vmatprep.subr.mxu0 0.0
        %587 = vmatpush2.msra.mxu0 0.0
        %588 = vmatprep.subr.mxu0 0.0
        %589 = vmatpush2.msra.mxu0 0.0
        %590 = vmatprep.subr.mxu0 0.0
        %591 = vmatpush2.msra.mxu0 0.0
        %592 = vmatprep.subr.mxu0 0.0
        %593 = vmatpush2.msra.mxu0 0.0
        %594 = vmatprep.subr.mxu0 0.0
        %595 = vmatpush2.msra.mxu0 0.0
        %596 = vmatprep.subr.mxu0 0.0
        %597 = vmatpush2.msra.mxu0 0.0
        %598 = vmatprep.subr.mxu0 0.0
        %599 = vmatpush2.msra.mxu0 0.0
        %600 = vmatprep.subr.mxu0 0.0
        %601 = vmatpush2.msra.mxu0 0.0
        %602 = vmatprep.subr.mxu0 0.0
        %603 = vmatpush2.msra.mxu0 0.0
        %604 = vmatprep.subr.mxu0 0.0
        %605 = vmatpush2.msra.mxu0 0.0
        %606 = vmatprep.mubr.f32.mxu0 0.0
        %607 = vmatmul.mubr.f32.gmra.mxu0 %v492
        %v608 = vpop.f32.mrf.mxu0
        %v609 = vadd.f32 %v535, %v608
        %v610 = vpop.f32.mrf.mxu0
        %611 = vmatprep.mubr.f32.mxu0 0.0
        %612 = vmatmul.mubr.f32.gmra.mxu0 %v493
        %v613 = vpop.f32.mrf.mxu0
        %v614 = vadd.f32 %v540, %v613
        %v615 = vpop.f32.mrf.mxu0
        %616 = vdwg.mxu0
        %617 = vst [vmem:[%s294] sm:$0xff] %v609
        %618 = vst [vmem:[%s294 + $0x8] sm:$0xff] %v614
        %s619 = sand.u32 %s203, 1
        %s620 = scalar_lea.sflag [#allocation3], %s619
        %s621 = sand.u32 %s203, 1
        %s622 = smul.addr %s621, 16
        %s623 = scalar_lea.vmem [#allocation2], %s622
        // Predicated region
        $region53: #{tpu_custom_call.1} parent=51 // pred_check
          %p624 = pneg %p213
        $region54: #{tpu_custom_call.1} parent=51 // pred_check_branch
          %626 = sbr.rel (%p624) target = $region56
        $region55: #{tpu_custom_call.1} parent=51 // pred_region
          %s628 = ssub.s32 256, 256
          %629 = vsyncadd %s620, %s628
          %s630 = smul.addr %s22, 2
          %s631 = smul.addr %s630, 128
          %s632 = scalar_lea.hbm %s8, %s631
          %s633 = sshll.u32 %s623, 4
          %s634 = int_to_ptr.vmem [resolvable:$true] %s633
          %639 = dma.vmem_to_hbm [thread:$0]  %s634, 256, %s632, %s620, 128, 128, 8
        $region56: #{tpu_custom_call.1} parent=51 // pred_fallthru
          _
      $region52: #{tpu_custom_call.1} parent=5 // pred_fallthru
        _
      %p640 = scmp.le.s32.totalorder 2, %s17
      // Predicated region
      $region57: #{tpu_custom_call.1} parent=5 // pred_check
        %p641 = pneg %p640
      $region58: #{tpu_custom_call.1} parent=5 // pred_check_branch
        %643 = sbr.rel (%p641) target = $region60
      $region59: #{tpu_custom_call.1} parent=5 // pred_region
        %s644 = ssub.s32 %s17, 2
        // Predicated region
        $region61: #{tpu_custom_call.1} parent=59 // pred_check
          %p645 = pneg %p219
        $region62: #{tpu_custom_call.1} parent=59 // pred_check_branch
          %647 = sbr.rel (%p645) target = $region64
        $region63: #{tpu_custom_call.1} parent=59 // pred_region
          %s648 = sand.u32 %s204, 1
          %s649 = scalar_lea.sflag [#allocation3], %s648
          %s650 = sand.u32 %s204, 1
          %s651 = smul.addr %s650, 16
          %s652 = scalar_lea.vmem [#allocation2], %s651
          %653 = dma.done %s649, 256
        $region64: #{tpu_custom_call.1} parent=59 // pred_fallthru
          _
      $region60: #{tpu_custom_call.1} parent=5 // pred_fallthru
        _
    $region6: #{tpu_custom_call.1} parent=1 // loop_footer
      %s21 = sadd.s32 1, %s17
    $region7: #{tpu_custom_call.1} parent=1 // loop_footer_branch
      %16 = sbr.rel target = $region3
    $region8: #{tpu_custom_call.1} parent=1 // loop_exit
      _
    %654 = vsyncpa [#allocation3], 1
    %s655 = scalar_lea.sflag [#allocation3], 1
    %656 = vsyncpa %s655, 1

</llo_original>
